<compile_context>
chip_gen: v5e
topology: v5e:2x2
jax: 0.10.0
libtpu: 0.0.40
codegen_flags: <defaults>
</compile_context>

<pallas_src>
import functools
import math

import jax
import jax.numpy as jnp
from jax.experimental import pallas as pl
from jax.experimental.pallas import tpu as pltpu


# ----------------------------------------------------------------------------
# Generation-aware tile / VMEM targets
# ----------------------------------------------------------------------------

def _tpu_targets():
    """Tile targets from physical VMEM (v5e/v6e: 128 MiB, v7x: 64 MiB)."""
    vmem_cap = 128 * 1024 * 1024
    try:
        vmem_cap = int(pltpu.get_tpu_info().vmem_capacity_bytes)
    except Exception:
        pass
    if vmem_cap >= 100 * 1024 * 1024:      # v5e / v6e (128 MiB VMEM)
        return {"tm": 512, "tn": 512, "tk": 512, "tq": 256, "vmem_cap": vmem_cap}
    # v7x (64 MiB VMEM): smaller q tiles / linear tiles
    return {"tm": 256, "tn": 256, "tk": 512, "tq": 128, "vmem_cap": vmem_cap}


def _vmem_limit(bytes_needed, vmem_cap):
    """Explicit scoped-VMEM limit; defaults (16/32 MiB) are too small for real tiles."""
    return int(max(32 * 1024 * 1024,
                   min(int(bytes_needed) + (8 << 20), int(0.9 * vmem_cap))))


def _tile(dim, target, align):
    """Largest divisor of `dim` that is <= target and a multiple of `align`,
    else the full dim (small / odd shapes fall back to a single block)."""
    if dim <= target:
        return dim
    t = target
    while t >= align:
        if dim % t == 0:
            return t
        t //= 2
    return dim


# ----------------------------------------------------------------------------
# Tiled linear (y = x @ w.T + b, PyTorch weight layout) as a Pallas kernel
# ----------------------------------------------------------------------------

def _linear_kernel(x_ref, w_ref, b_ref, o_ref, acc_ref, *, compute_dtype):
    # x: (tm, tk), w: (tn, tk) [PyTorch (out, in) layout], b: (1, tn)
    @pl.when(pl.program_id(2) == 0)
    def _():
        acc_ref[...] = jnp.zeros_like(acc_ref)

    acc_ref[...] += jax.lax.dot_general(
        x_ref[...].astype(compute_dtype), w_ref[...].astype(compute_dtype),
        dimension_numbers=(((1,), (1,)), ((), ())),   # contract K on both; no .T
        preferred_element_type=jnp.float32)

    @pl.when(pl.program_id(2) == pl.num_programs(2) - 1)
    def _():
        o_ref[...] = (acc_ref[...] + b_ref[...]).astype(o_ref.dtype)


def linear(x2d, w, bvec, *, compute_dtype=jnp.float32):
    """x2d: (M, K) @ w.T + b -> (M, N).  w: (N, K) (PyTorch nn.Linear layout)."""
    m, kdim = x2d.shape
    n = w.shape[0]
    b2d = bvec.reshape(1, n)

    tgt = _tpu_targets()
    tm = _tile(m, tgt["tm"], 8)
    tn = _tile(n, tgt["tn"], 128)
    tk = _tile(kdim, tgt["tk"], 128)
    grid = (m // tm, n // tn, kdim // tk)

    # Working set per step (double-buffered blocks + accumulator scratch).
    ws = 2 * 4 * (tm * tk + tn * tk + tm * tn + tn) + 4 * tm * tn
    vmem_limit = _vmem_limit(ws, tgt["vmem_cap"])

    cost = pl.CostEstimate(
        flops=int(2 * m * n * kdim),
        transcendentals=0,
        bytes_accessed=int(4 * (m * kdim + n * kdim + m * n + n)))

    kernel = functools.partial(_linear_kernel, compute_dtype=compute_dtype)

    return pl.pallas_call(
        kernel,
        out_shape=jax.ShapeDtypeStruct((m, n), jnp.float32),
        grid=grid,
        in_specs=[
            pl.BlockSpec((tm, tk), lambda i, j, kk: (i, kk)),
            pl.BlockSpec((tn, tk), lambda i, j, kk: (j, kk)),
            pl.BlockSpec((1, tn), lambda i, j, kk: (0, j)),
        ],
        out_specs=pl.BlockSpec((tm, tn), lambda i, j, kk: (i, j)),
        scratch_shapes=[pltpu.VMEM((tm, tn), jnp.float32)],
        compiler_params=pltpu.CompilerParams(
            dimension_semantics=("parallel", "parallel", "arbitrary"),
            vmem_limit_bytes=vmem_limit),
        cost_estimate=cost,
    )(x2d, w, b2d)


# ----------------------------------------------------------------------------
# Scaled dot-product attention: all heads of one batch element per grid step.
# Lane-dense (tq, E) / (Sk, E) blocks; head split/merge is an in-kernel reshape.
# ----------------------------------------------------------------------------

def _mha_attention_kernel(q_ref, k_ref, v_ref, o_ref, w_ref, *,
                          num_heads, compute_dtype):
    # q_ref: (tq, E); k_ref/v_ref: (Sk, E); o_ref: (tq, E); w_ref: (H, tq, Sk)
    tq, e = q_ref.shape
    sk = k_ref.shape[0]
    h = num_heads
    d = e // h

    # Lane-dense loads; split heads in VMEM (no HBM transposes).
    q = q_ref[...].reshape(tq, h, d).astype(compute_dtype)
    k = k_ref[...].reshape(sk, h, d).astype(compute_dtype)

    # NOTE: the 1/sqrt(D) scale is folded into the Q projection weights.
    # Einsum on the native (seq, head, dim) layout; Mosaic picks the relayout.
    s = jnp.einsum("qhd,khd->hqk", q, k, preferred_element_type=jnp.float32)

    m = jnp.max(s, axis=-1, keepdims=True)
    ez = jnp.exp(s - m)
    denom = jnp.sum(ez, axis=-1, keepdims=True)
    p = ez * pl.reciprocal(denom, approx=True)     # EUP reciprocal + multiply

    w_ref[...] = p.astype(w_ref.dtype)             # (H, tq, Sk) attention weights
    # TODO(synk): attention dropout is identity in eval mode.

    v = v_ref[...].reshape(sk, h, d).astype(compute_dtype)
    o = jnp.einsum("hqk,khd->qhd", p.astype(compute_dtype), v,
                   preferred_element_type=jnp.float32)
    # Merge heads back to a lane-dense (tq, E) block (matches (B, Sq, E) output).
    o_ref[...] = o.reshape(tq, e).astype(o_ref.dtype)


def attention(q4, k4, v4, q_slot, k_slot, v_slot, num_heads, *,
              compute_dtype=jnp.float32, weights_dtype=jnp.float32):
    """q4/k4/v4: (B, S, P, E) arrays (may all alias the fused QKV projection);
    *_slot selects which P-slice holds that tensor.  Returns
    (output (B, Sq, E), attn_weights (B, H, Sq, Sk))."""
    b, sq, _, e = q4.shape
    sk = k4.shape[1]
    h = num_heads

    tgt = _tpu_targets()
    tq = _tile(sq, tgt["tq"], 8)
    grid = (b, sq // tq)

    w_item = jnp.dtype(weights_dtype).itemsize
    # Double-buffered in/out blocks plus f32 score temporaries.
    ws = 2 * (4 * (tq * e + 2 * sk * e + tq * e) + w_item * h * tq * sk) \
        + 3 * 4 * h * tq * sk
    vmem_limit = _vmem_limit(ws, tgt["vmem_cap"])

    cost = pl.CostEstimate(
        flops=int(4 * b * h * sq * sk * (e // h)),
        transcendentals=int(b * h * sq * sk),
        bytes_accessed=int(4 * (2 * b * sq * e + 2 * b * sk * e)
                           + w_item * b * h * sq * sk))

    kernel = functools.partial(_mha_attention_kernel, num_heads=h,
                               compute_dtype=compute_dtype)

    return pl.pallas_call(
        kernel,
        out_shape=(
            jax.ShapeDtypeStruct((b, sq, e), jnp.float32),       # merged-head output
            jax.ShapeDtypeStruct((b, h, sq, sk), weights_dtype),  # attention weights
        ),
        grid=grid,
        in_specs=[
            pl.BlockSpec((None, tq, None, e),
                         lambda i, j, _p=q_slot: (i, j, _p, 0)),
            # K/V index maps are constant over j -> stay VMEM-resident across q tiles.
            pl.BlockSpec((None, sk, None, e),
                         lambda i, j, _p=k_slot: (i, 0, _p, 0)),
            pl.BlockSpec((None, sk, None, e),
                         lambda i, j, _p=v_slot: (i, 0, _p, 0)),
        ],
        out_specs=(
            pl.BlockSpec((None, tq, e), lambda i, j: (i, j, 0)),
            pl.BlockSpec((None, h, tq, sk), lambda i, j: (i, 0, j, 0)),
        ),
        compiler_params=pltpu.CompilerParams(
            dimension_semantics=("parallel", "parallel"),
            vmem_limit_bytes=vmem_limit),
        cost_estimate=cost,
    )(q4, k4, v4)


# ----------------------------------------------------------------------------
# MultiHeadAttention forward
# ----------------------------------------------------------------------------

def init_mha_params(key, embed_dim):
    """Deterministic PyTorch-nn.Linear-style init (uniform +-1/sqrt(fan_in))."""
    bound = 1.0 / math.sqrt(embed_dim)
    keys = jax.random.split(key, 8)
    params = {}
    for i, name in enumerate(["q", "k", "v", "out"]):
        w = jax.random.uniform(keys[2 * i], (embed_dim, embed_dim),
                               minval=-bound, maxval=bound, dtype=jnp.float32)
        b = jax.random.uniform(keys[2 * i + 1], (embed_dim,),
                               minval=-bound, maxval=bound, dtype=jnp.float32)
        params[name] = (w, b)
    return params


def multi_head_attention(params, q, k, v, num_heads, *,
                         compute_dtype=jnp.float32,
                         weights_dtype=jnp.float32):
    """q: (B, Sq, E), k/v: (B, Sk, E).
    Returns (output (B, Sq, E), attn_weights (B, H, Sq, Sk))."""
    b, sq, e = q.shape
    sk = k.shape[1]
    h = num_heads
    d = e // h
    scale = 1.0 / math.sqrt(d)   # folded into the Q projection (free)

    wq, bq = params["q"]
    wk, bk = params["k"]
    wv, bv = params["v"]
    wo, bo = params["out"]

    if (q is k) and (k is v):
        # Self-attention fast path: single fused QKV projection (N = 3E).
        w_qkv = jnp.concatenate([wq * scale, wk, wv], axis=0)     # (3E, E)
        b_qkv = jnp.concatenate([bq * scale, bk, bv], axis=0)     # (3E,)
        qkv = linear(q.reshape(b * sq, e), w_qkv, b_qkv,
                     compute_dtype=compute_dtype)                  # (B*Sq, 3E)
        qkv4 = qkv.reshape(b, sq, 3, e)                            # free reshape
        q4 = k4 = v4 = qkv4
        q_slot, k_slot, v_slot = 0, 1, 2
    elif k is v:
        # Cross-attention partial fusion: one fused KV projection (N = 2E).
        w_kv = jnp.concatenate([wk, wv], axis=0)                   # (2E, E)
        b_kv = jnp.concatenate([bk, bv], axis=0)
        kvp = linear(k.reshape(b * sk, e), w_kv, b_kv,
                     compute_dtype=compute_dtype)                  # (B*Sk, 2E)
        qp = linear(q.reshape(b * sq, e), wq * scale, bq * scale,
                    compute_dtype=compute_dtype)
        q4 = qp.reshape(b, sq, 1, e)
        k4 = v4 = kvp.reshape(b, sk, 2, e)
        q_slot, k_slot, v_slot = 0, 0, 1
    else:
        # Distinct q/k/v activations: three tiled matmuls.
        qp = linear(q.reshape(b * sq, e), wq * scale, bq * scale,
                    compute_dtype=compute_dtype)
        kp = linear(k.reshape(b * sk, e), wk, bk, compute_dtype=compute_dtype)
        vp = linear(v.reshape(b * sk, e), wv, bv, compute_dtype=compute_dtype)
        q4 = qp.reshape(b, sq, 1, e)
        k4 = kp.reshape(b, sk, 1, e)
        v4 = vp.reshape(b, sk, 1, e)
        q_slot = k_slot = v_slot = 0

    # Attention kernel: lane-dense (tq, E)/(Sk, E) blocks, heads split in VMEM,
    # output already in (B, Sq, E) layout.
    oh, attn = attention(q4, k4, v4, q_slot, k_slot, v_slot, h,
                         compute_dtype=compute_dtype, weights_dtype=weights_dtype)

    # Output projection consumes the merged-head layout with a free reshape.
    out = linear(oh.reshape(b * sq, e), wo, bo,
                 compute_dtype=compute_dtype).reshape(b, sq, e)
    # TODO(synk): output dropout is identity in eval mode.
    return out, attn


# ----------------------------------------------------------------------------
# Pure-JAX reference for sanity checking
# ----------------------------------------------------------------------------

def reference_mha(params, q, k, v, num_heads):
    b, sq, e = q.shape
    sk = k.shape[1]
    h = num_heads
    d = e // h
    wq, bq = params["q"]
    wk, bk = params["k"]
    wv, bv = params["v"]
    wo, bo = params["out"]
    qp = (q @ wq.T + bq).reshape(b, sq, h, d).transpose(0, 2, 1, 3)
    kp = (k @ wk.T + bk).reshape(b, sk, h, d).transpose(0, 2, 1, 3)
    vp = (v @ wv.T + bv).reshape(b, sk, h, d).transpose(0, 2, 1, 3)
    scores = jnp.einsum("bhqd,bhkd->bhqk", qp, kp) / math.sqrt(d)
    attn = jax.nn.softmax(scores, axis=-1)
    o = jnp.einsum("bhqk,bhkd->bhqd", attn, vp)
    o = o.transpose(0, 2, 1, 3).reshape(b, sq, e)
    out = o @ wo.T + bo
    return out, attn


# ----------------------------------------------------------------------------
# Main
# ----------------------------------------------------------------------------

if __name__ == "__main__":
    B, S, E, H = 2, 8, 32, 4   # batch, seq, embed_dim, num_heads (head_dim = 8)
    S_KV = 16                  # longer KV sequence for the cross-attention test

    key = jax.random.PRNGKey(0)
    k_params, k_x, k_q, k_k, k_v = jax.random.split(key, 5)
    params = init_mha_params(k_params, E)

    # 1) self-attention (q is k is v): fused QKV projection path, f32 MXU.
    x = jax.random.normal(k_x, (B, S, E), dtype=jnp.float32)
    out_sa, attn_sa = multi_head_attention(params, x, x, x, H)
    out_sa = jax.block_until_ready(out_sa)
    attn_sa = jax.block_until_ready(attn_sa)
    ref_out_sa, ref_attn_sa = reference_mha(params, x, x, x, H)
    assert out_sa.shape == (B, S, E)
    assert attn_sa.shape == (B, H, S, S)
    assert jnp.allclose(out_sa, ref_out_sa, atol=1e-3, rtol=1e-3)
    assert jnp.allclose(attn_sa, ref_attn_sa, atol=1e-3, rtol=1e-3)

    # 2) cross-attention (k is v, q distinct, longer KV): fused KV projection path.
    q_in = jax.random.normal(k_q, (B, S, E), dtype=jnp.float32)
    kv_in = jax.random.normal(k_k, (B, S_KV, E), dtype=jnp.float32)
    out_ca, attn_ca = multi_head_attention(params, q_in, kv_in, kv_in, H)
    out_ca = jax.block_until_ready(out_ca)
    attn_ca = jax.block_until_ready(attn_ca)
    ref_out_ca, ref_attn_ca = reference_mha(params, q_in, kv_in, kv_in, H)
    assert out_ca.shape == (B, S, E)
    assert attn_ca.shape == (B, H, S, S_KV)
    assert jnp.allclose(out_ca, ref_out_ca, atol=1e-3, rtol=1e-3)
    assert jnp.allclose(attn_ca, ref_attn_ca, atol=1e-3, rtol=1e-3)

    # 3) fully distinct q/k/v: three separate projections.
    k_in = jax.random.normal(k_k, (B, S, E), dtype=jnp.float32)
    v_in = jax.random.normal(k_v, (B, S, E), dtype=jnp.float32)
    out, attn_w = multi_head_attention(params, q_in, k_in, v_in, H)
    out = jax.block_until_ready(out)
    attn_w = jax.block_until_ready(attn_w)
    ref_out, ref_attn = reference_mha(params, q_in, k_in, v_in, H)
    assert out.shape == (B, S, E)
    assert attn_w.shape == (B, H, S, S)
    assert jnp.allclose(out, ref_out, atol=1e-3, rtol=1e-3)
    assert jnp.allclose(attn_w, ref_attn, atol=1e-3, rtol=1e-3)

    # 4) bf16 MXU operands (f32 accumulate) + bf16 attention-weights writeback.
    out_bf, attn_bf = multi_head_attention(
        params, x, x, x, H,
        compute_dtype=jnp.bfloat16, weights_dtype=jnp.bfloat16)
    out_bf = jax.block_until_ready(out_bf)
    attn_bf = jax.block_until_ready(attn_bf)
    assert out_bf.shape == (B, S, E)
    assert attn_bf.shape == (B, H, S, S)
    assert jnp.allclose(out_bf, ref_out_sa, atol=3e-2, rtol=3e-2)
    assert jnp.allclose(attn_bf.astype(jnp.float32), ref_attn_sa,
                        atol=3e-2, rtol=3e-2)

    print("KERNEL_OK")
</pallas_src>

<mosaic_0001>
module attributes {stable_mosaic.version = 11 : i64} {
  func.func @_linear_kernel(%arg0: i32, %arg1: i32, %arg2: i32, %arg3: memref<16x32xf32, #tpu.memory_space<vmem>>, %arg4: memref<96x32xf32, #tpu.memory_space<vmem>>, %arg5: memref<1x96xf32, #tpu.memory_space<vmem>>, %arg6: memref<16x96xf32, #tpu.memory_space<vmem>>, %arg7: memref<16x96xf32, #tpu.memory_space<vmem>>) attributes {dimension_semantics = [#tpu.dimension_semantics<parallel>, #tpu.dimension_semantics<parallel>, #tpu.dimension_semantics<arbitrary>], iteration_bounds = array<i64: 1, 1, 1>, scalar_prefetch = 0 : i64, scratch_operands = 1 : i64, tpu.core_type = #tpu.core_type<tc>, window_params = [{transform_indices = @transform_0, window_bounds = array<i64: 16, 32>}, {transform_indices = @transform_1, window_bounds = array<i64: 96, 32>}, {transform_indices = @transform_2, window_bounds = array<i64: 1, 96>}, {transform_indices = @transform_3, window_bounds = array<i64: 16, 96>}]} {
    %c0_i32 = arith.constant 0 : i32
    %0 = arith.cmpi eq, %arg2, %c0_i32 : i32
    %1 = arith.extui %0 : i1 to i32
    %c0_i32_0 = arith.constant 0 : i32
    %2 = arith.cmpi ne, %1, %c0_i32_0 : i32
    scf.if %2 {
      %cst_10 = arith.constant 0.000000e+00 : f32
      %12 = vector.broadcast %cst_10 : f32 to vector<16x96xf32>
      %c0_11 = arith.constant 0 : index
      %c0_12 = arith.constant 0 : index
      %13 = vector.load %arg7[%c0_11, %c0_12] : memref<16x96xf32, #tpu.memory_space<vmem>>, vector<16x96xf32>
      tpu.vector_store %arg7[%c0_11, %c0_12], %12 {strides = array<i32>} : memref<16x96xf32, #tpu.memory_space<vmem>>, vector<16x96xf32>,
    } else {
    }
    %c0 = arith.constant 0 : index
    %c0_1 = arith.constant 0 : index
    %3 = vector.load %arg7[%c0, %c0_1] : memref<16x96xf32, #tpu.memory_space<vmem>>, vector<16x96xf32>
    %c0_2 = arith.constant 0 : index
    %c0_3 = arith.constant 0 : index
    %4 = vector.load %arg3[%c0_2, %c0_3] : memref<16x32xf32, #tpu.memory_space<vmem>>, vector<16x32xf32>
    %c0_4 = arith.constant 0 : index
    %c0_5 = arith.constant 0 : index
    %5 = vector.load %arg4[%c0_4, %c0_5] : memref<96x32xf32, #tpu.memory_space<vmem>>, vector<96x32xf32>
    %cst = arith.constant dense<0.000000e+00> : vector<16x96xf32>
    %6 = tpu.matmul %4, %5, %cst {dimension_numbers = #tpu.dot_dimension_numbers<[1], [1], [0], [0], [0, 0, 1, 0], [], []>} : vector<16x32xf32>, vector<96x32xf32>, vector<16x96xf32> -> vector<16x96xf32>
    %7 = arith.addf %3, %6 : vector<16x96xf32>
    %c0_6 = arith.constant 0 : index
    %c0_7 = arith.constant 0 : index
    %8 = vector.load %arg7[%c0_6, %c0_7] : memref<16x96xf32, #tpu.memory_space<vmem>>, vector<16x96xf32>
    tpu.vector_store %arg7[%c0_6, %c0_7], %7 {strides = array<i32>} : memref<16x96xf32, #tpu.memory_space<vmem>>, vector<16x96xf32>,
    %c0_i32_8 = arith.constant 0 : i32
    %9 = arith.cmpi eq, %arg2, %c0_i32_8 : i32
    %10 = arith.extui %9 : i1 to i32
    %c0_i32_9 = arith.constant 0 : i32
    %11 = arith.cmpi ne, %10, %c0_i32_9 : i32
    scf.if %11 {
      %c0_10 = arith.constant 0 : index
      %c0_11 = arith.constant 0 : index
      %12 = vector.load %arg7[%c0_10, %c0_11] : memref<16x96xf32, #tpu.memory_space<vmem>>, vector<16x96xf32>
      %c0_12 = arith.constant 0 : index
      %c0_13 = arith.constant 0 : index
      %13 = vector.load %arg5[%c0_12, %c0_13] : memref<1x96xf32, #tpu.memory_space<vmem>>, vector<1x96xf32>
      %14 = vector.broadcast %13 : vector<1x96xf32> to vector<16x96xf32>
      %15 = arith.addf %12, %14 : vector<16x96xf32>
      %c0_14 = arith.constant 0 : index
      %c0_15 = arith.constant 0 : index
      %16 = vector.load %arg6[%c0_14, %c0_15] : memref<16x96xf32, #tpu.memory_space<vmem>>, vector<16x96xf32>
      tpu.vector_store %arg6[%c0_14, %c0_15], %15 {strides = array<i32>} : memref<16x96xf32, #tpu.memory_space<vmem>>, vector<16x96xf32>,
    } else {
    }
    return
  }
  func.func @transform_0(%arg0: i32, %arg1: i32, %arg2: i32) -> (i32, i32) {
    %c0_i32 = arith.constant 0 : i32
    return %arg0, %arg2 : i32, i32
  }
  func.func @transform_1(%arg0: i32, %arg1: i32, %arg2: i32) -> (i32, i32) {
    %c0_i32 = arith.constant 0 : i32
    return %arg1, %arg2 : i32, i32
  }
  func.func @transform_2(%arg0: i32, %arg1: i32, %arg2: i32) -> (i32, i32) {
    %c0_i32 = arith.constant 0 : i32
    %c0_i32_0 = arith.constant 0 : i32
    return %c0_i32, %arg1 : i32, i32
  }
  func.func @transform_3(%arg0: i32, %arg1: i32, %arg2: i32) -> (i32, i32) {
    %c0_i32 = arith.constant 0 : i32
    return %arg0, %arg1 : i32, i32
  }
}

</mosaic_0001>

<llo_original>
// kernel: tpu_custom_call.1
$region0: #{tpu_custom_call.1}
  #allocation0 [shape = 'u32[]', space=smem, size = 0x4, offset = 0x4, fixed_abs, tag = 'smem constant byte address 0x4 - core index']
  #allocation1 [shape = 'u32[72,128]{1,0:T(1,128)}', space=vmem, size = 0x9000, scoped, tag = 'internal scratch']
  #allocation2 [shape = 'f32[16,96]{1,0:T(8,128)}', space=vmem, size = 0x2000, scoped, tag = 'scratch operand']
  %s0 = inlined_call_operand.vmem [shape: f32[16,32], index: 0, kind: input, shape index: {}]
  %s1 = inlined_call_operand.vmem [shape: f32[96,32], index: 1, kind: input, shape index: {}]
  %s2 = inlined_call_operand.vmem [shape: f32[1,96], index: 2, kind: input, shape index: {}]
  %s3 = inlined_call_operand.hbm [shape: f32[16,96], index: 3, kind: output, shape index: {}]
  %s4 = sld [smem:[#allocation0]]
  $region30: #{tpu_custom_call.1} parent=0
    _
  %s6 = ssub.s32 1, %s4
  %s7 = scalar_select 0, %s6, %s4
  $region1: #{tpu_custom_call.1} parent=0
    #allocation3 [shape = 'u8[8192]{0}', space=vmem, size = 0x2000, scoped, tag = 'output window, operand 0, single buffered']
    #allocation4 [shape = 's32[1]{0}', space=sflag, size = 0x4, scoped, tag = 'scoped memory for tpu_custom_call.1']
    %8 = vsyncpa [#allocation4], 0
    // Predicated region
    $region2: #{tpu_custom_call.1} parent=1 // pred_check
      _
    $region3: #{tpu_custom_call.1} parent=1 // pred_check_branch
      %10 = sbr.rel (0) target = $region5
    $region4: #{tpu_custom_call.1} parent=1 // pred_region
      _
    $region5: #{tpu_custom_call.1} parent=1 // pred_fallthru
      _
    // Predicated region
    $region6: #{tpu_custom_call.1} parent=1 // pred_check
      _
    $region7: #{tpu_custom_call.1} parent=1 // pred_check_branch
      %12 = sbr.rel (0) target = $region9
    $region8: #{tpu_custom_call.1} parent=1 // pred_region
      _
    $region9: #{tpu_custom_call.1} parent=1 // pred_fallthru
      _
    // Predicated region
    $region10: #{tpu_custom_call.1} parent=1 // pred_check
      _
    $region11: #{tpu_custom_call.1} parent=1 // pred_check_branch
      %14 = sbr.rel (0) target = $region13
    $region12: #{tpu_custom_call.1} parent=1 // pred_region
      _
    $region13: #{tpu_custom_call.1} parent=1 // pred_fallthru
      _
    %p15 = scmp.eq.s32.totalorder 0, 0
    // Predicated region
    $region14: #{tpu_custom_call.1} parent=1 // pred_check
      %p16 = pneg %p15
    $region15: #{tpu_custom_call.1} parent=1 // pred_check_branch
      %18 = sbr.rel (%p16) target = $region17
    $region16: #{tpu_custom_call.1} parent=1 // pred_region
      %vm19 = vcmask 785408
      %20 = vst.msk [vmem:[#allocation2] sm:$0xff] %vm19, 0.0
      %21 = vst.msk [vmem:[#allocation2 + $0x8] sm:$0xff] %vm19, 0.0
    $region17: #{tpu_custom_call.1} parent=1 // pred_fallthru
      _
    %v22 = vld [vmem:[#allocation2] sm:$0xff]
    %v23 = vld [vmem:[#allocation2 + $0x8] sm:$0xff]
    %v24 = vld [vmem:[%s0] sm:$0xff]
    %v25 = vld [vmem:[%s0 + $0x8] sm:$0xff]
    %v26 = vld [vmem:[%s1] sm:$0xff]
    %v27 = vld [vmem:[%s1 + $0x8] sm:$0xff]
    %v28 = vld [vmem:[%s1 + $0x10] sm:$0xff]
    %v29 = vld [vmem:[%s1 + $0x18] sm:$0xff]
    %v30 = vld [vmem:[%s1 + $0x20] sm:$0xff]
    %v31 = vld [vmem:[%s1 + $0x28] sm:$0xff]
    %v32 = vld [vmem:[%s1 + $0x30] sm:$0xff]
    %v33 = vld [vmem:[%s1 + $0x38] sm:$0xff]
    %v34 = vld [vmem:[%s1 + $0x40] sm:$0xff]
    %v35 = vld [vmem:[%s1 + $0x48] sm:$0xff]
    %v36 = vld [vmem:[%s1 + $0x50] sm:$0xff]
    %v37 = vld [vmem:[%s1 + $0x58] sm:$0xff]
    %vm38 = vcmask 261120
    %v40 = vsel %vm38, %v24, 0
    %v43 = vsel %vm38, %v25, 0
    %v46 = vsel %vm38, %v26, 0
    %v49 = vsel %vm38, %v27, 0
    %v52 = vsel %vm38, %v28, 0
    %v55 = vsel %vm38, %v29, 0
    %v58 = vsel %vm38, %v30, 0
    %v61 = vsel %vm38, %v31, 0
    %v64 = vsel %vm38, %v32, 0
    %v67 = vsel %vm38, %v33, 0
    %v70 = vsel %vm38, %v34, 0
    %v73 = vsel %vm38, %v35, 0
    %v76 = vsel %vm38, %v36, 0
    %v79 = vsel %vm38, %v37, 0
    %81 = vmatpush.xpose.msra.mxu0 0.0
    %82 = vmatpush.xpose.msra.mxu0 0.0
    %83 = vmatpush.xpose.msra.mxu0 0.0
    %84 = vmatpush.xpose.msra.mxu0 0.0
    %85 = vmatpush.xpose.msra.mxu0 %v79
    %86 = vmatpush.xpose.msra.mxu0 %v76
    %87 = vmatpush.xpose.msra.mxu0 %v73
    %88 = vmatpush.xpose.msra.mxu0 %v70
    %89 = vmatpush.xpose.msra.mxu0 %v67
    %90 = vmatpush.xpose.msra.mxu0 %v64
    %91 = vmatpush.xpose.msra.mxu0 %v61
    %92 = vmatpush.xpose.msra.mxu0 %v58
    %93 = vmatpush.xpose.msra.mxu0 %v55
    %94 = vmatpush.xpose.msra.mxu0 %v52
    %95 = vmatpush.xpose.msra.mxu0 %v49
    %96 = vmatpush.xpose.msra.mxu0 %v46
    %97 = vmatmul.f32.gmra.mxu0 %v40
    %v98 = vpop.f32.mrf.mxu0
    %v99 = vadd.f32 0.0, %v98
    %100 = vmatmul.f32.gmra.mxu0 %v43
    %v101 = vpop.f32.mrf.mxu0
    %v102 = vadd.f32 0.0, %v101
    %103 = vdwg.mxu0
    %v104 = vadd.f32 %v22, %v99
    %v105 = vadd.f32 %v23, %v102
    %vm106 = vcmask 785408
    %107 = vst.msk [vmem:[#allocation2] sm:$0xff] %vm106, %v104
    %108 = vst.msk [vmem:[#allocation2 + $0x8] sm:$0xff] %vm106, %v105
    // Predicated region
    $region18: #{tpu_custom_call.1} parent=1 // pred_check
      %p109 = pneg %p15
    $region19: #{tpu_custom_call.1} parent=1 // pred_check_branch
      %111 = sbr.rel (%p109) target = $region21
    $region20: #{tpu_custom_call.1} parent=1 // pred_region
      %v112 = vld [vmem:[#allocation2] sm:$0xff]
      %v113 = vld [vmem:[#allocation2 + $0x8] sm:$0xff]
      %v114 = vld [vmem:[%s2] sm:$0x1]
      %v116 = vperm.slane %v114, 0
      %v118 = vadd.f32 %v112, %v116
      %v119 = vadd.f32 %v113, %v116
      %120 = vst.msk [vmem:[#allocation3] sm:$0xff] %vm106, %v118
      %121 = vst.msk [vmem:[#allocation3 + $0x8] sm:$0xff] %vm106, %v119
    $region21: #{tpu_custom_call.1} parent=1 // pred_fallthru
      _
    // Predicated region
    $region22: #{tpu_custom_call.1} parent=1 // pred_check
      _
    $region23: #{tpu_custom_call.1} parent=1 // pred_check_branch
      %123 = sbr.rel (0) target = $region25
    $region24: #{tpu_custom_call.1} parent=1 // pred_region
      %125 = vsyncadd [#allocation4], 0
      %s126 = sshll.u32 [#allocation3], 4
      %s127 = int_to_ptr.vmem [resolvable:$true] %s126
      %s128 = sshll.u32 %s3, 4
      %s129 = int_to_ptr.hbm [resolvable:$true] %s128
      %134 = dma.vmem_to_hbm [thread:$0]  %s127, 256, %s129, [#allocation4], 128, 128, 8
    $region25: #{tpu_custom_call.1} parent=1 // pred_fallthru
      _
    // Predicated region
    $region26: #{tpu_custom_call.1} parent=1 // pred_check
      _
    $region27: #{tpu_custom_call.1} parent=1 // pred_check_branch
      %136 = sbr.rel (0) target = $region29
    $region28: #{tpu_custom_call.1} parent=1 // pred_region
      %138 = dma.done [#allocation4], 256
    $region29: #{tpu_custom_call.1} parent=1 // pred_fallthru
      _
    %139 = vsyncpa [#allocation4], 1

</llo_original>
